<compile_context>
chip_gen: v5e
topology: v5e:2x2
jax: 0.10.0
libtpu: 0.0.40
codegen_flags: <defaults>
</compile_context>

<pallas_src>
import jax
import jax.numpy as jnp
from jax.experimental import pallas as pl
from jax.experimental.pallas import tpu as pltpu


_ROW_ALIGN = 16   # works for both f32 (8,128) and bf16 (16,128) row tiling


def _round_up(n, m):
    return ((n + m - 1) // m) * m


def _pick_tm(rows, tm_max):
    """Pick the row-tile size.

    Large tiles amortize the ~0.35us per-grid-step overhead (measured scaling:
    85%+ of HBM roofline at >=512-row tiles), but we keep at least 2 grid
    steps when there is enough work so the "parallel" grid axis can shard
    across v7x's 2 TensorCores (v5e/v6e have 1 TC; a second step on a big
    tile costs ~nothing there).
    """
    aligned = _round_up(max(rows, 1), _ROW_ALIGN)
    half = _round_up(pl.cdiv(aligned, 2), _ROW_ALIGN)
    return min(tm_max, max(half, _ROW_ALIGN))


def highway_stack_kernel(x_ref, w_ref, b_ref, o_ref):
    """Fused stack of L highway layers on one (tm, D) batch tile.

    x_ref: (tm, D)    f32 or bf16  activations (rows = flattened batch*time)
    w_ref: (L, D, 2D) bf16         per-layer [Wh | 0.5*Wt], (in, out) layout
    b_ref: (L, 1, 2D) f32          per-layer [bh | 0.5*bt]
    o_ref: (tm, D)    same dtype as x_ref

    Per layer:  z = x @ [Wh | 0.5*Wt] + [bh | 0.5*bt]
                h = relu(z[:, :D])
                t = 0.5*(tanh(z[:, D:]) + 1)        # == sigmoid(x@Wt + bt)
                x = x + t * (h - x)                 # == h*t + x*(1-t)
    """
    D = o_ref.shape[-1]
    L = w_ref.shape[0]
    x_in = x_ref[...]
    x = x_in.astype(jnp.float32)        # f32 running state (v5e-safe epilogue)
    xb = x_in.astype(jnp.bfloat16)      # bf16 MXU operand (free if I/O is bf16)
    for l in range(L):                  # L=4, static unroll
        z = jnp.dot(xb, w_ref[l],
                    preferred_element_type=jnp.float32) + b_ref[l]
        h = jnp.maximum(z[:, :D], 0.0)                  # ReLU          (VPU)
        t = 0.5 * jnp.tanh(z[:, D:]) + 0.5              # sigmoid, 1 EUP push
        x = x + t * (h - x)                             # highway combine (VPU)
        xb = x.astype(jnp.bfloat16)
    o_ref[...] = x.astype(o_ref.dtype)


def highway_stack(x, w_cat, b_cat, *, tm_max=1024):
    """x: (rows, D) f32 or bf16.  w_cat: (L, D, 2D).  b_cat: (L, 2D).

    Returns (rows, D) in x.dtype.  Passing bf16 x halves the kernel's HBM
    traffic; internal math is f32 either way.
    """
    rows, D = x.shape
    L, d_in, d_out2 = w_cat.shape
    assert d_in == D and d_out2 == 2 * D and b_cat.shape == (L, 2 * D)

    tm = _pick_tm(rows, tm_max)
    grid = (pl.cdiv(rows, tm),)   # ragged last block: OOB writes are masked

    # Pre-scale the transfer-gate half by 0.5 so the kernel's sigmoid is a
    # single tanh (sigmoid(u) = 0.5*(tanh(u/2)+1)).  0.5 is a power of two,
    # so this is numerically exact.
    scale = jnp.concatenate(
        [jnp.ones((D,), jnp.float32), jnp.full((D,), 0.5, jnp.float32)])
    w_prep = (w_cat.astype(jnp.float32) * scale).astype(jnp.bfloat16)
    b_prep = (b_cat.astype(jnp.float32) * scale).reshape(L, 1, 2 * D)

    grid_spec = pl.GridSpec(
        grid=grid,
        in_specs=[
            pl.BlockSpec((tm, D), lambda i: (i, 0)),           # x tile
            # Grid-invariant weights/biases (VMEM-resident across steps).
            # pipeline_mode=pl.Buffered(1) would save ~0.26 MiB here on v7x;
            # skipped at D=128 (see header note).
            pl.BlockSpec((L, D, 2 * D), lambda i: (0, 0, 0)),  # [Wh|0.5*Wt]
            pl.BlockSpec((L, 1, 2 * D), lambda i: (0, 0, 0)),  # [bh|0.5*bt]
        ],
        out_specs=pl.BlockSpec((tm, D), lambda i: (i, 0)),
    )

    return pl.pallas_call(
        highway_stack_kernel,
        out_shape=jax.ShapeDtypeStruct((rows, D), x.dtype),
        grid_spec=grid_spec,
        compiler_params=pltpu.CompilerParams(
            dimension_semantics=("parallel",),      # megacore / 2-TC sharding
            # headroom for the unrolled 4-layer f32 intermediates at tm=1024
            # (well under physical VMEM on v5e/v6e/v7x).
            vmem_limit_bytes=32 * 1024 * 1024),
    )(x, w_prep, b_prep)


def highway_stack_btd(x_btd, w_cat, b_cat, *, tm_max=1024):
    """CBHG-shaped entry: x_btd is (batch, time, D) as fed to cbhg.highways."""
    b_, t_, d_ = x_btd.shape
    out = highway_stack(x_btd.reshape(b_ * t_, d_), w_cat, b_cat, tm_max=tm_max)
    return out.reshape(b_, t_, d_)


def highway_stack_ref_f32(x, wh, bh, wt, bt):
    """Pure-JAX f32 reference matching the PyTorch Highway stack forward."""
    for l in range(wh.shape[0]):
        h = jax.nn.relu(x @ wh[l] + bh[l])
        t = jax.nn.sigmoid(x @ wt[l] + bt[l])
        x = h * t + x * (1.0 - t)
    return x


def highway_stack_ref_bf16(x, wh, bh, wt, bt):
    """Reference with the same bf16-operand / f32-accumulate matmuls as the kernel."""
    for l in range(wh.shape[0]):
        xb = x.astype(jnp.bfloat16)
        h = jax.nn.relu(jnp.dot(xb, wh[l].astype(jnp.bfloat16),
                                preferred_element_type=jnp.float32) + bh[l])
        t = jax.nn.sigmoid(jnp.dot(xb, wt[l].astype(jnp.bfloat16),
                                   preferred_element_type=jnp.float32) + bt[l])
        x = x + t * (h - x)
    return x


if __name__ == "__main__":
    # CBHG config: highway_features = 128, num_highways = 4.
    # Small module-consistent shapes: batch=2, time=8, D=128.
    B, T, D, L = 2, 8, 128, 4
    key = jax.random.PRNGKey(0)
    kx, kw = jax.random.split(key)

    x = jax.random.normal(kx, (B, T, D), dtype=jnp.float32)

    # Deterministic per-layer params.  PyTorch stores Linear weight as
    # (out, in); generate that, then transpose to (in, out) for the kernel.
    # Xavier-uniform per Highway.init_layers; bh = 0, bt = -1 per __init__.
    limit_h = (6.0 / (D + D)) ** 0.5 * (2.0 ** 0.5)   # gain('relu') = sqrt(2)
    limit_t = (6.0 / (D + D)) ** 0.5                  # gain('sigmoid') = 1
    wkeys = jax.random.split(kw, 2 * L)
    wh = jnp.stack([jax.random.uniform(wkeys[2 * l], (D, D), jnp.float32,
                                       -limit_h, limit_h).T for l in range(L)])
    wt = jnp.stack([jax.random.uniform(wkeys[2 * l + 1], (D, D), jnp.float32,
                                       -limit_t, limit_t).T for l in range(L)])
    bh = jnp.zeros((L, D), jnp.float32)
    bt = jnp.full((L, D), -1.0, jnp.float32)

    w_cat = jnp.concatenate([wh, wt], axis=-1)        # (L, D, 2D)
    b_cat = jnp.concatenate([bh, bt], axis=-1)        # (L, 2D)

    # ---- small shape, f32 activation I/O ----
    out = jax.block_until_ready(highway_stack_btd(x, w_cat, b_cat))
    assert out.shape == (B, T, D) and out.dtype == jnp.float32

    x2 = x.reshape(B * T, D)
    ref_bf16 = highway_stack_ref_bf16(x2, wh, bh, wt, bt).reshape(B, T, D)
    ref_f32 = highway_stack_ref_f32(x2, wh, bh, wt, bt).reshape(B, T, D)
    # Tight check against a reference using the same bf16-operand matmuls.
    assert jnp.allclose(out, ref_bf16, atol=5e-3, rtol=5e-3), "mismatch vs bf16 ref"
    # Loose sanity check vs the pure-f32 PyTorch-equivalent reference
    # (bf16 MXU operands -> ~1e-2-level deviation expected).
    assert jnp.allclose(out, ref_f32, atol=1.5e-1, rtol=1e-1), "mismatch vs f32 ref"

    # ---- small shape, bf16 activation I/O (halves HBM traffic, v5e/v6e win) ----
    xb16 = x.astype(jnp.bfloat16)
    out_b = jax.block_until_ready(highway_stack_btd(xb16, w_cat, b_cat))
    assert out_b.dtype == jnp.bfloat16 and out_b.shape == (B, T, D)
    ref_bio = highway_stack_ref_bf16(
        xb16.astype(jnp.float32).reshape(B * T, D), wh, bh, wt, bt).reshape(B, T, D)
    assert jnp.allclose(out_b.astype(jnp.float32), ref_bio,
                        atol=3e-2, rtol=3e-2), "mismatch vs bf16-I/O ref"

    # ---- large ragged shape: multi-step grid + masked partial last block ----
    T2 = 521   # 2*521 = 1042 rows -> tm=528, grid=2, 14 OOB rows masked
    xl = jax.random.normal(jax.random.PRNGKey(1), (B, T2, D), dtype=jnp.float32)
    out_l = jax.block_until_ready(highway_stack_btd(xl, w_cat, b_cat))
    ref_l = highway_stack_ref_bf16(
        xl.reshape(B * T2, D), wh, bh, wt, bt).reshape(B, T2, D)
    assert jnp.allclose(out_l, ref_l, atol=5e-3, rtol=5e-3), "mismatch (large f32)"

    xlb = xl.astype(jnp.bfloat16)
    out_lb = jax.block_until_ready(highway_stack_btd(xlb, w_cat, b_cat))
    ref_lb = highway_stack_ref_bf16(
        xlb.astype(jnp.float32).reshape(B * T2, D), wh, bh, wt, bt).reshape(B, T2, D)
    assert jnp.allclose(out_lb.astype(jnp.float32), ref_lb,
                        atol=3e-2, rtol=3e-2), "mismatch (large bf16 I/O)"

    print("KERNEL_OK")
</pallas_src>

<mosaic_0001>
module attributes {stable_mosaic.version = 11 : i64} {
  func.func @highway_stack_kernel(%arg0: i32, %arg1: memref<16x128xf32, #tpu.memory_space<vmem>>, %arg2: memref<4x128x256xbf16, #tpu.memory_space<vmem>>, %arg3: memref<4x1x256xf32, #tpu.memory_space<vmem>>, %arg4: memref<16x128xf32, #tpu.memory_space<vmem>>) attributes {dimension_semantics = [#tpu.dimension_semantics<parallel>], iteration_bounds = array<i64: 1>, scalar_prefetch = 0 : i64, scratch_operands = 0 : i64, tpu.core_type = #tpu.core_type<tc>, window_params = [{transform_indices = @transform_0, window_bounds = array<i64: 16, 128>}, {pipeline_mode = #tpu.pipeline_mode<synchronous>, transform_indices = @transform_1, window_bounds = array<i64: 4, 128, 256>}, {pipeline_mode = #tpu.pipeline_mode<synchronous>, transform_indices = @transform_2, window_bounds = array<i64: 4, 1, 256>}, {transform_indices = @transform_3, window_bounds = array<i64: 16, 128>}]} {
    %c0 = arith.constant 0 : index
    %c0_0 = arith.constant 0 : index
    %0 = vector.load %arg1[%c0, %c0_0] : memref<16x128xf32, #tpu.memory_space<vmem>>, vector<16x128xf32>
    %1 = arith.truncf %0 : vector<16x128xf32> to vector<16x128xbf16>
    %c0_1 = arith.constant 0 : index
    %c0_2 = arith.constant 0 : index
    %c0_3 = arith.constant 0 : index
    %2 = vector.load %arg2[%c0_1, %c0_2, %c0_3] : memref<4x128x256xbf16, #tpu.memory_space<vmem>>, vector<1x128x256xbf16>
    %3 = vector.shape_cast %2 : vector<1x128x256xbf16> to vector<128x256xbf16>
    %cst = arith.constant dense<0.000000e+00> : vector<16x256xf32>
    %4 = tpu.matmul %1, %3, %cst {dimension_numbers = #tpu.dot_dimension_numbers<[1], [0], [0], [1], [0, 0, 1, 1], [], []>} : vector<16x128xbf16>, vector<128x256xbf16>, vector<16x256xf32> -> vector<16x256xf32>
    %c0_4 = arith.constant 0 : index
    %c0_5 = arith.constant 0 : index
    %c0_6 = arith.constant 0 : index
    %5 = vector.load %arg3[%c0_4, %c0_5, %c0_6] : memref<4x1x256xf32, #tpu.memory_space<vmem>>, vector<1x1x256xf32>
    %6 = vector.shape_cast %5 : vector<1x1x256xf32> to vector<1x256xf32>
    %7 = vector.broadcast %6 : vector<1x256xf32> to vector<16x256xf32>
    %8 = arith.addf %4, %7 : vector<16x256xf32>
    %9 = vector.extract_strided_slice %8 {offsets = [0, 0], sizes = [16, 128], strides = [1, 1]} : vector<16x256xf32> to vector<16x128xf32>
    %cst_7 = arith.constant 0.000000e+00 : f32
    %10 = vector.broadcast %cst_7 : f32 to vector<16x128xf32>
    %11 = arith.maximumf %9, %10 : vector<16x128xf32>
    %12 = vector.extract_strided_slice %8 {offsets = [0, 128], sizes = [16, 128], strides = [1, 1]} : vector<16x256xf32> to vector<16x128xf32>
    %13 = math.tanh %12 : vector<16x128xf32>
    %cst_8 = arith.constant 5.000000e-01 : f32
    %14 = vector.broadcast %cst_8 : f32 to vector<16x128xf32>
    %15 = arith.mulf %14, %13 : vector<16x128xf32>
    %cst_9 = arith.constant 5.000000e-01 : f32
    %16 = vector.broadcast %cst_9 : f32 to vector<16x128xf32>
    %17 = arith.addf %15, %16 : vector<16x128xf32>
    %18 = arith.subf %11, %0 : vector<16x128xf32>
    %19 = arith.mulf %17, %18 : vector<16x128xf32>
    %20 = arith.addf %0, %19 : vector<16x128xf32>
    %21 = arith.truncf %20 : vector<16x128xf32> to vector<16x128xbf16>
    %c1 = arith.constant 1 : index
    %c0_10 = arith.constant 0 : index
    %c0_11 = arith.constant 0 : index
    %22 = vector.load %arg2[%c1, %c0_10, %c0_11] : memref<4x128x256xbf16, #tpu.memory_space<vmem>>, vector<1x128x256xbf16>
    %23 = vector.shape_cast %22 : vector<1x128x256xbf16> to vector<128x256xbf16>
    %cst_12 = arith.constant dense<0.000000e+00> : vector<16x256xf32>
    %24 = tpu.matmul %21, %23, %cst_12 {dimension_numbers = #tpu.dot_dimension_numbers<[1], [0], [0], [1], [0, 0, 1, 1], [], []>} : vector<16x128xbf16>, vector<128x256xbf16>, vector<16x256xf32> -> vector<16x256xf32>
    %c1_13 = arith.constant 1 : index
    %c0_14 = arith.constant 0 : index
    %c0_15 = arith.constant 0 : index
    %25 = vector.load %arg3[%c1_13, %c0_14, %c0_15] : memref<4x1x256xf32, #tpu.memory_space<vmem>>, vector<1x1x256xf32>
    %26 = vector.shape_cast %25 : vector<1x1x256xf32> to vector<1x256xf32>
    %27 = vector.broadcast %26 : vector<1x256xf32> to vector<16x256xf32>
    %28 = arith.addf %24, %27 : vector<16x256xf32>
    %29 = vector.extract_strided_slice %28 {offsets = [0, 0], sizes = [16, 128], strides = [1, 1]} : vector<16x256xf32> to vector<16x128xf32>
    %cst_16 = arith.constant 0.000000e+00 : f32
    %30 = vector.broadcast %cst_16 : f32 to vector<16x128xf32>
    %31 = arith.maximumf %29, %30 : vector<16x128xf32>
    %32 = vector.extract_strided_slice %28 {offsets = [0, 128], sizes = [16, 128], strides = [1, 1]} : vector<16x256xf32> to vector<16x128xf32>
    %33 = math.tanh %32 : vector<16x128xf32>
    %cst_17 = arith.constant 5.000000e-01 : f32
    %34 = vector.broadcast %cst_17 : f32 to vector<16x128xf32>
    %35 = arith.mulf %34, %33 : vector<16x128xf32>
    %cst_18 = arith.constant 5.000000e-01 : f32
    %36 = vector.broadcast %cst_18 : f32 to vector<16x128xf32>
    %37 = arith.addf %35, %36 : vector<16x128xf32>
    %38 = arith.subf %31, %20 : vector<16x128xf32>
    %39 = arith.mulf %37, %38 : vector<16x128xf32>
    %40 = arith.addf %20, %39 : vector<16x128xf32>
    %41 = arith.truncf %40 : vector<16x128xf32> to vector<16x128xbf16>
    %c2 = arith.constant 2 : index
    %c0_19 = arith.constant 0 : index
    %c0_20 = arith.constant 0 : index
    %42 = vector.load %arg2[%c2, %c0_19, %c0_20] : memref<4x128x256xbf16, #tpu.memory_space<vmem>>, vector<1x128x256xbf16>
    %43 = vector.shape_cast %42 : vector<1x128x256xbf16> to vector<128x256xbf16>
    %cst_21 = arith.constant dense<0.000000e+00> : vector<16x256xf32>
    %44 = tpu.matmul %41, %43, %cst_21 {dimension_numbers = #tpu.dot_dimension_numbers<[1], [0], [0], [1], [0, 0, 1, 1], [], []>} : vector<16x128xbf16>, vector<128x256xbf16>, vector<16x256xf32> -> vector<16x256xf32>
    %c2_22 = arith.constant 2 : index
    %c0_23 = arith.constant 0 : index
    %c0_24 = arith.constant 0 : index
    %45 = vector.load %arg3[%c2_22, %c0_23, %c0_24] : memref<4x1x256xf32, #tpu.memory_space<vmem>>, vector<1x1x256xf32>
    %46 = vector.shape_cast %45 : vector<1x1x256xf32> to vector<1x256xf32>
    %47 = vector.broadcast %46 : vector<1x256xf32> to vector<16x256xf32>
    %48 = arith.addf %44, %47 : vector<16x256xf32>
    %49 = vector.extract_strided_slice %48 {offsets = [0, 0], sizes = [16, 128], strides = [1, 1]} : vector<16x256xf32> to vector<16x128xf32>
    %cst_25 = arith.constant 0.000000e+00 : f32
    %50 = vector.broadcast %cst_25 : f32 to vector<16x128xf32>
    %51 = arith.maximumf %49, %50 : vector<16x128xf32>
    %52 = vector.extract_strided_slice %48 {offsets = [0, 128], sizes = [16, 128], strides = [1, 1]} : vector<16x256xf32> to vector<16x128xf32>
    %53 = math.tanh %52 : vector<16x128xf32>
    %cst_26 = arith.constant 5.000000e-01 : f32
    %54 = vector.broadcast %cst_26 : f32 to vector<16x128xf32>
    %55 = arith.mulf %54, %53 : vector<16x128xf32>
    %cst_27 = arith.constant 5.000000e-01 : f32
    %56 = vector.broadcast %cst_27 : f32 to vector<16x128xf32>
    %57 = arith.addf %55, %56 : vector<16x128xf32>
    %58 = arith.subf %51, %40 : vector<16x128xf32>
    %59 = arith.mulf %57, %58 : vector<16x128xf32>
    %60 = arith.addf %40, %59 : vector<16x128xf32>
    %61 = arith.truncf %60 : vector<16x128xf32> to vector<16x128xbf16>
    %c3 = arith.constant 3 : index
    %c0_28 = arith.constant 0 : index
    %c0_29 = arith.constant 0 : index
    %62 = vector.load %arg2[%c3, %c0_28, %c0_29] : memref<4x128x256xbf16, #tpu.memory_space<vmem>>, vector<1x128x256xbf16>
    %63 = vector.shape_cast %62 : vector<1x128x256xbf16> to vector<128x256xbf16>
    %cst_30 = arith.constant dense<0.000000e+00> : vector<16x256xf32>
    %64 = tpu.matmul %61, %63, %cst_30 {dimension_numbers = #tpu.dot_dimension_numbers<[1], [0], [0], [1], [0, 0, 1, 1], [], []>} : vector<16x128xbf16>, vector<128x256xbf16>, vector<16x256xf32> -> vector<16x256xf32>
    %c3_31 = arith.constant 3 : index
    %c0_32 = arith.constant 0 : index
    %c0_33 = arith.constant 0 : index
    %65 = vector.load %arg3[%c3_31, %c0_32, %c0_33] : memref<4x1x256xf32, #tpu.memory_space<vmem>>, vector<1x1x256xf32>
    %66 = vector.shape_cast %65 : vector<1x1x256xf32> to vector<1x256xf32>
    %67 = vector.broadcast %66 : vector<1x256xf32> to vector<16x256xf32>
    %68 = arith.addf %64, %67 : vector<16x256xf32>
    %69 = vector.extract_strided_slice %68 {offsets = [0, 0], sizes = [16, 128], strides = [1, 1]} : vector<16x256xf32> to vector<16x128xf32>
    %cst_34 = arith.constant 0.000000e+00 : f32
    %70 = vector.broadcast %cst_34 : f32 to vector<16x128xf32>
    %71 = arith.maximumf %69, %70 : vector<16x128xf32>
    %72 = vector.extract_strided_slice %68 {offsets = [0, 128], sizes = [16, 128], strides = [1, 1]} : vector<16x256xf32> to vector<16x128xf32>
    %73 = math.tanh %72 : vector<16x128xf32>
    %cst_35 = arith.constant 5.000000e-01 : f32
    %74 = vector.broadcast %cst_35 : f32 to vector<16x128xf32>
    %75 = arith.mulf %74, %73 : vector<16x128xf32>
    %cst_36 = arith.constant 5.000000e-01 : f32
    %76 = vector.broadcast %cst_36 : f32 to vector<16x128xf32>
    %77 = arith.addf %75, %76 : vector<16x128xf32>
    %78 = arith.subf %71, %60 : vector<16x128xf32>
    %79 = arith.mulf %77, %78 : vector<16x128xf32>
    %80 = arith.addf %60, %79 : vector<16x128xf32>
    %c0_37 = arith.constant 0 : index
    %c0_38 = arith.constant 0 : index
    %81 = vector.load %arg4[%c0_37, %c0_38] : memref<16x128xf32, #tpu.memory_space<vmem>>, vector<16x128xf32>
    tpu.vector_store %arg4[%c0_37, %c0_38], %80 {strides = array<i32>} : memref<16x128xf32, #tpu.memory_space<vmem>>, vector<16x128xf32>,
    return
  }
  func.func @transform_0(%arg0: i32) -> (i32, i32) {
    %c0_i32 = arith.constant 0 : i32
    %c0_i32_0 = arith.constant 0 : i32
    return %arg0, %c0_i32 : i32, i32
  }
  func.func @transform_1(%arg0: i32) -> (i32, i32, i32) {
    %c0_i32 = arith.constant 0 : i32
    %c0_i32_0 = arith.constant 0 : i32
    %c0_i32_1 = arith.constant 0 : i32
    %c0_i32_2 = arith.constant 0 : i32
    return %c0_i32, %c0_i32_0, %c0_i32_1 : i32, i32, i32
  }
  func.func @transform_2(%arg0: i32) -> (i32, i32, i32) {
    %c0_i32 = arith.constant 0 : i32
    %c0_i32_0 = arith.constant 0 : i32
    %c0_i32_1 = arith.constant 0 : i32
    %c0_i32_2 = arith.constant 0 : i32
    return %c0_i32, %c0_i32_0, %c0_i32_1 : i32, i32, i32
  }
  func.func @transform_3(%arg0: i32) -> (i32, i32) {
    %c0_i32 = arith.constant 0 : i32
    %c0_i32_0 = arith.constant 0 : i32
    return %arg0, %c0_i32 : i32, i32
  }
}

</mosaic_0001>

<llo_original>
// kernel: tpu_custom_call.1
$region0: #{tpu_custom_call.1}
  #allocation0 [shape = 'u32[]', space=smem, size = 0x4, offset = 0x4, fixed_abs, tag = 'smem constant byte address 0x4 - core index']
  #allocation1 [shape = 'u32[72,128]{1,0:T(1,128)}', space=vmem, size = 0x9000, scoped, tag = 'internal scratch']
  %s0 = inlined_call_operand.hbm [shape: f32[16,128], index: 0, kind: input, shape index: {}]
  %s1 = inlined_call_operand.hbm [shape: bf16[4,128,256], index: 1, kind: input, shape index: {}]
  %s2 = inlined_call_operand.hbm [shape: f32[4,1,256], index: 2, kind: input, shape index: {}]
  %s3 = inlined_call_operand.hbm [shape: f32[16,128], index: 3, kind: output, shape index: {}]
  %s4 = sld [smem:[#allocation0]]
  $region34: #{tpu_custom_call.1} parent=0
    _
  %s6 = ssub.s32 1, %s4
  %s7 = scalar_select 0, %s6, %s4
  $region1: #{tpu_custom_call.1} parent=0
    #allocation2 [shape = 'u8[8192]{0}', space=vmem, size = 0x2000, scoped, tag = 'input window, operand 0, single buffered']
    #allocation3 [shape = 's32[1]{0}', space=sflag, size = 0x4, scoped, tag = 'scoped memory for tpu_custom_call.1']
    #allocation4 [shape = 's32[1]{0}', space=sflag, size = 0x4, scoped, tag = 'scoped memory for tpu_custom_call.1']
    #allocation5 [shape = 'u8[262144]{0}', space=vmem, size = 0x40000, scoped, tag = 'input window, operand 1, single buffered']
    #allocation6 [shape = 's32[1]{0}', space=sflag, size = 0x4, scoped, tag = 'scoped memory for tpu_custom_call.1']
    #allocation7 [shape = 'u8[4096]{0}', space=vmem, size = 0x1000, scoped, tag = 'input window, operand 2, single buffered']
    #allocation8 [shape = 'u8[8192]{0}', space=vmem, size = 0x2000, scoped, tag = 'output window, operand 0, single buffered']
    %8 = vsyncpa [#allocation3], 0
    %9 = vsyncpa [#allocation6], 0
    %10 = vsyncpa [#allocation4], 0
    // Predicated region
    $region2: #{tpu_custom_call.1} parent=1 // pred_check
      _
    $region3: #{tpu_custom_call.1} parent=1 // pred_check_branch
      %12 = sbr.rel (0) target = $region5
    $region4: #{tpu_custom_call.1} parent=1 // pred_region
      %14 = vsyncadd [#allocation3], 0
      %s15 = sshll.u32 %s0, 4
      %s16 = int_to_ptr.hbm [resolvable:$true] %s15
      %s17 = sshll.u32 [#allocation2], 4
      %s18 = int_to_ptr.vmem [resolvable:$true] %s17
      %23 = dma.hbm_to_vmem [thread:$0]  %s16, 256, %s18, [#allocation3], 128, 128, 8
    $region5: #{tpu_custom_call.1} parent=1 // pred_fallthru
      _
    // Predicated region
    $region6: #{tpu_custom_call.1} parent=1 // pred_check
      _
    $region7: #{tpu_custom_call.1} parent=1 // pred_check_branch
      %25 = sbr.rel (0) target = $region9
    $region8: #{tpu_custom_call.1} parent=1 // pred_region
      %27 = vsyncadd [#allocation6], 0
      %s28 = sshll.u32 %s1, 4
      %s29 = int_to_ptr.hbm [resolvable:$true] %s28
      %s30 = sshll.u32 [#allocation5], 4
      %s31 = int_to_ptr.vmem [resolvable:$true] %s30
      %36 = dma.hbm_to_vmem [thread:$0]  %s29, 8192, %s31, [#allocation6], 128, 128, 8
    $region9: #{tpu_custom_call.1} parent=1 // pred_fallthru
      _
    // Predicated region
    $region10: #{tpu_custom_call.1} parent=1 // pred_check
      _
    $region11: #{tpu_custom_call.1} parent=1 // pred_check_branch
      %38 = sbr.rel (0) target = $region13
    $region12: #{tpu_custom_call.1} parent=1 // pred_region
      %40 = vsyncadd [#allocation6], 0
      %s41 = sshll.u32 %s2, 4
      %s42 = int_to_ptr.hbm [resolvable:$true] %s41
      %s43 = sshll.u32 [#allocation7], 4
      %s44 = int_to_ptr.vmem [resolvable:$true] %s43
      %49 = dma.hbm_to_vmem [thread:$0]  %s42, 128, %s44, [#allocation6], 32, 32, 2
    $region13: #{tpu_custom_call.1} parent=1 // pred_fallthru
      _
    // Predicated region
    $region14: #{tpu_custom_call.1} parent=1 // pred_check
      _
    $region15: #{tpu_custom_call.1} parent=1 // pred_check_branch
      %51 = sbr.rel (0) target = $region17
    $region16: #{tpu_custom_call.1} parent=1 // pred_region
      %53 = dma.done [#allocation3], 256
    $region17: #{tpu_custom_call.1} parent=1 // pred_fallthru
      _
    // Predicated region
    $region18: #{tpu_custom_call.1} parent=1 // pred_check
      _
    $region19: #{tpu_custom_call.1} parent=1 // pred_check_branch
      %55 = sbr.rel (0) target = $region21
    $region20: #{tpu_custom_call.1} parent=1 // pred_region
      %57 = dma.done [#allocation6], 8192
    $region21: #{tpu_custom_call.1} parent=1 // pred_fallthru
      _
    // Predicated region
    $region22: #{tpu_custom_call.1} parent=1 // pred_check
      _
    $region23: #{tpu_custom_call.1} parent=1 // pred_check_branch
      %59 = sbr.rel (0) target = $region25
    $region24: #{tpu_custom_call.1} parent=1 // pred_region
      %61 = dma.done [#allocation6], 128
    $region25: #{tpu_custom_call.1} parent=1 // pred_fallthru
      _
    %v62 = vld [vmem:[#allocation2] sm:$0xff]
    %v63 = vld [vmem:[#allocation2 + $0x8] sm:$0xff]
    %v64 = vpack.c.bf16 %v63, %v62
    %v65 = vld [vmem:[#allocation5] sm:$0xff]
    %v66 = vld [vmem:[#allocation5 + $0x8] sm:$0xff]
    %v67 = vld [vmem:[#allocation5 + $0x10] sm:$0xff]
    %v68 = vld [vmem:[#allocation5 + $0x18] sm:$0xff]
    %v69 = vld [vmem:[#allocation5 + $0x20] sm:$0xff]
    %v70 = vld [vmem:[#allocation5 + $0x28] sm:$0xff]
    %v71 = vld [vmem:[#allocation5 + $0x30] sm:$0xff]
    %v72 = vld [vmem:[#allocation5 + $0x38] sm:$0xff]
    %v73 = vld [vmem:[#allocation5 + $0x40] sm:$0xff]
    %v74 = vld [vmem:[#allocation5 + $0x48] sm:$0xff]
    %v75 = vld [vmem:[#allocation5 + $0x50] sm:$0xff]
    %v76 = vld [vmem:[#allocation5 + $0x58] sm:$0xff]
    %v77 = vld [vmem:[#allocation5 + $0x60] sm:$0xff]
    %v78 = vld [vmem:[#allocation5 + $0x68] sm:$0xff]
    %v79 = vld [vmem:[#allocation5 + $0x70] sm:$0xff]
    %v80 = vld [vmem:[#allocation5 + $0x78] sm:$0xff]
    %v81 = vld [vmem:[#allocation7] sm:$0x3]
    %v83 = vperm.slane %v81, 0
    %v84 = vperm.slane %v81, 1
    %v103 = vunpack.c.l.b16 %v65
    %v104 = vunpack.c.h.b16 %v65
    %v105 = vunpack.c.l.b16 %v66
    %v106 = vunpack.c.h.b16 %v66
    %v107 = vunpack.c.l.b16 %v67
    %v108 = vunpack.c.h.b16 %v67
    %v109 = vunpack.c.l.b16 %v68
    %v110 = vunpack.c.h.b16 %v68
    %v111 = vunpack.c.l.b16 %v69
    %v112 = vunpack.c.h.b16 %v69
    %v113 = vunpack.c.l.b16 %v70
    %v114 = vunpack.c.h.b16 %v70
    %v115 = vunpack.c.l.b16 %v71
    %v116 = vunpack.c.h.b16 %v71
    %v117 = vunpack.c.l.b16 %v72
    %v118 = vunpack.c.h.b16 %v72
    %v119 = vunpack.c.l.b16 %v73
    %v120 = vunpack.c.h.b16 %v73
    %v121 = vunpack.c.l.b16 %v74
    %v122 = vunpack.c.h.b16 %v74
    %v123 = vunpack.c.l.b16 %v75
    %v124 = vunpack.c.h.b16 %v75
    %v125 = vunpack.c.l.b16 %v76
    %v126 = vunpack.c.h.b16 %v76
    %v127 = vunpack.c.l.b16 %v77
    %v128 = vunpack.c.h.b16 %v77
    %v129 = vunpack.c.l.b16 %v78
    %v130 = vunpack.c.h.b16 %v78
    %v131 = vunpack.c.l.b16 %v79
    %v132 = vunpack.c.h.b16 %v79
    %v133 = vunpack.c.l.b16 %v80
    %v134 = vunpack.c.h.b16 %v80
    %v135 = vpack.c.b16 %v105, %v103
    %v136 = vpack.c.b16 %v106, %v104
    %v137 = vpack.c.b16 %v109, %v107
    %v138 = vpack.c.b16 %v110, %v108
    %v139 = vpack.c.b16 %v113, %v111
    %v140 = vpack.c.b16 %v114, %v112
    %v141 = vpack.c.b16 %v117, %v115
    %v142 = vpack.c.b16 %v118, %v116
    %v143 = vpack.c.b16 %v121, %v119
    %v144 = vpack.c.b16 %v122, %v120
    %v145 = vpack.c.b16 %v125, %v123
    %v146 = vpack.c.b16 %v126, %v124
    %v147 = vpack.c.b16 %v129, %v127
    %v148 = vpack.c.b16 %v130, %v128
    %v149 = vpack.c.b16 %v133, %v131
    %v150 = vpack.c.b16 %v134, %v132
    %167 = vmatpush.bf16.msra.mxu0 %v149
    %168 = vmatpush.bf16.msra.mxu0 %v147
    %169 = vmatpush.bf16.msra.mxu0 %v145
    %170 = vmatpush.bf16.msra.mxu0 %v143
    %171 = vmatpush.bf16.msra.mxu0 %v141
    %172 = vmatpush.bf16.msra.mxu0 %v139
    %173 = vmatpush.bf16.msra.mxu0 %v137
    %174 = vmatpush.bf16.msra.mxu0 %v135
    %175 = vmatmul.bf16.gmra.mxu0 %v64
    %v176 = vpop.f32.mrf.mxu0
    %v177 = vadd.f32 %v83, %v176
    %v178 = vpop.f32.mrf.mxu0
    %v179 = vadd.f32 %v83, %v178
    %180 = vdwg.mxu0
    %181 = vmatpush.bf16.msra.mxu0 %v150
    %182 = vmatpush.bf16.msra.mxu0 %v148
    %183 = vmatpush.bf16.msra.mxu0 %v146
    %184 = vmatpush.bf16.msra.mxu0 %v144
    %185 = vmatpush.bf16.msra.mxu0 %v142
    %186 = vmatpush.bf16.msra.mxu0 %v140
    %187 = vmatpush.bf16.msra.mxu0 %v138
    %188 = vmatpush.bf16.msra.mxu0 %v136
    %189 = vmatmul.bf16.gmra.mxu0 %v64
    %v190 = vpop.f32.mrf.mxu0
    %v191 = vadd.f32 %v84, %v190
    %v192 = vpop.f32.mrf.mxu0
    %v193 = vadd.f32 %v84, %v192
    %194 = vdwg.mxu0
    %v195 = vmax.f32 %v177, 0.0
    %v196 = vmax.f32 %v179, 0.0
    %v197 = vtanh.pop %v191
    %v198 = vtanh.pop %v193
    %v199 = vmul.f32 %v197, 0.5
    %v200 = vmul.f32 %v198, 0.5
    %v201 = vadd.f32 %v199, 0.5
    %v202 = vadd.f32 %v200, 0.5
    %v203 = vsub.f32 %v195, %v62
    %v204 = vsub.f32 %v196, %v63
    %v205 = vmul.f32 %v201, %v203
    %v206 = vmul.f32 %v202, %v204
    %v207 = vadd.f32 %v62, %v205
    %v208 = vadd.f32 %v63, %v206
    %v209 = vpack.c.bf16 %v208, %v207
    %s210 = scalar_lea.vmem [#allocation5], 128
    %v211 = vld [vmem:[%s210] sm:$0xff]
    %v212 = vld [vmem:[%s210 + $0x8] sm:$0xff]
    %v213 = vld [vmem:[%s210 + $0x10] sm:$0xff]
    %v214 = vld [vmem:[%s210 + $0x18] sm:$0xff]
    %v215 = vld [vmem:[%s210 + $0x20] sm:$0xff]
    %v216 = vld [vmem:[%s210 + $0x28] sm:$0xff]
    %v217 = vld [vmem:[%s210 + $0x30] sm:$0xff]
    %v218 = vld [vmem:[%s210 + $0x38] sm:$0xff]
    %v219 = vld [vmem:[%s210 + $0x40] sm:$0xff]
    %v220 = vld [vmem:[%s210 + $0x48] sm:$0xff]
    %v221 = vld [vmem:[%s210 + $0x50] sm:$0xff]
    %v222 = vld [vmem:[%s210 + $0x58] sm:$0xff]
    %v223 = vld [vmem:[%s210 + $0x60] sm:$0xff]
    %v224 = vld [vmem:[%s210 + $0x68] sm:$0xff]
    %v225 = vld [vmem:[%s210 + $0x70] sm:$0xff]
    %v226 = vld [vmem:[%s210 + $0x78] sm:$0xff]
    %s227 = scalar_lea.vmem [#allocation7], 2
    %v228 = vld [vmem:[%s227] sm:$0x3]
    %v230 = vperm.slane %v228, 0
    %v231 = vperm.slane %v228, 1
    %v250 = vunpack.c.l.b16 %v211
    %v251 = vunpack.c.h.b16 %v211
    %v252 = vunpack.c.l.b16 %v212
    %v253 = vunpack.c.h.b16 %v212
    %v254 = vunpack.c.l.b16 %v213
    %v255 = vunpack.c.h.b16 %v213
    %v256 = vunpack.c.l.b16 %v214
    %v257 = vunpack.c.h.b16 %v214
    %v258 = vunpack.c.l.b16 %v215
    %v259 = vunpack.c.h.b16 %v215
    %v260 = vunpack.c.l.b16 %v216
    %v261 = vunpack.c.h.b16 %v216
    %v262 = vunpack.c.l.b16 %v217
    %v263 = vunpack.c.h.b16 %v217
    %v264 = vunpack.c.l.b16 %v218
    %v265 = vunpack.c.h.b16 %v218
    %v266 = vunpack.c.l.b16 %v219
    %v267 = vunpack.c.h.b16 %v219
    %v268 = vunpack.c.l.b16 %v220
    %v269 = vunpack.c.h.b16 %v220
    %v270 = vunpack.c.l.b16 %v221
    %v271 = vunpack.c.h.b16 %v221
    %v272 = vunpack.c.l.b16 %v222
    %v273 = vunpack.c.h.b16 %v222
    %v274 = vunpack.c.l.b16 %v223
    %v275 = vunpack.c.h.b16 %v223
    %v276 = vunpack.c.l.b16 %v224
    %v277 = vunpack.c.h.b16 %v224
    %v278 = vunpack.c.l.b16 %v225
    %v279 = vunpack.c.h.b16 %v225
    %v280 = vunpack.c.l.b16 %v226
    %v281 = vunpack.c.h.b16 %v226
    %v282 = vpack.c.b16 %v252, %v250
    %v283 = vpack.c.b16 %v253, %v251
    %v284 = vpack.c.b16 %v256, %v254
    %v285 = vpack.c.b16 %v257, %v255
    %v286 = vpack.c.b16 %v260, %v258
    %v287 = vpack.c.b16 %v261, %v259
    %v288 = vpack.c.b16 %v264, %v262
    %v289 = vpack.c.b16 %v265, %v263
    %v290 = vpack.c.b16 %v268, %v266
    %v291 = vpack.c.b16 %v269, %v267
    %v292 = vpack.c.b16 %v272, %v270
    %v293 = vpack.c.b16 %v273, %v271
    %v294 = vpack.c.b16 %v276, %v274
    %v295 = vpack.c.b16 %v277, %v275
    %v296 = vpack.c.b16 %v280, %v278
    %v297 = vpack.c.b16 %v281, %v279
    %314 = vmatpush.bf16.msra.mxu0 %v296
    %315 = vmatpush.bf16.msra.mxu0 %v294
    %316 = vmatpush.bf16.msra.mxu0 %v292
    %317 = vmatpush.bf16.msra.mxu0 %v290
    %318 = vmatpush.bf16.msra.mxu0 %v288
    %319 = vmatpush.bf16.msra.mxu0 %v286
    %320 = vmatpush.bf16.msra.mxu0 %v284
    %321 = vmatpush.bf16.msra.mxu0 %v282
    %322 = vmatmul.bf16.gmra.mxu0 %v209
    %v323 = vpop.f32.mrf.mxu0
    %v324 = vadd.f32 %v230, %v323
    %v325 = vpop.f32.mrf.mxu0
    %v326 = vadd.f32 %v230, %v325
    %327 = vdwg.mxu0
    %328 = vmatpush.bf16.msra.mxu0 %v297
    %329 = vmatpush.bf16.msra.mxu0 %v295
    %330 = vmatpush.bf16.msra.mxu0 %v293
    %331 = vmatpush.bf16.msra.mxu0 %v291
    %332 = vmatpush.bf16.msra.mxu0 %v289
    %333 = vmatpush.bf16.msra.mxu0 %v287
    %334 = vmatpush.bf16.msra.mxu0 %v285
    %335 = vmatpush.bf16.msra.mxu0 %v283
    %336 = vmatmul.bf16.gmra.mxu0 %v209
    %v337 = vpop.f32.mrf.mxu0
    %v338 = vadd.f32 %v231, %v337
    %v339 = vpop.f32.mrf.mxu0
    %v340 = vadd.f32 %v231, %v339
    %341 = vdwg.mxu0
    %v342 = vmax.f32 %v324, 0.0
    %v343 = vmax.f32 %v326, 0.0
    %v344 = vtanh.pop %v338
    %v345 = vtanh.pop %v340
    %v346 = vmul.f32 %v344, 0.5
    %v347 = vmul.f32 %v345, 0.5
    %v348 = vadd.f32 %v346, 0.5
    %v349 = vadd.f32 %v347, 0.5
    %v350 = vsub.f32 %v342, %v207
    %v351 = vsub.f32 %v343, %v208
    %v352 = vmul.f32 %v348, %v350
    %v353 = vmul.f32 %v349, %v351
    %v354 = vadd.f32 %v207, %v352
    %v355 = vadd.f32 %v208, %v353
    %v356 = vpack.c.bf16 %v355, %v354
    %s357 = scalar_lea.vmem [#allocation5], 256
    %v358 = vld [vmem:[%s357] sm:$0xff]
    %v359 = vld [vmem:[%s357 + $0x8] sm:$0xff]
    %v360 = vld [vmem:[%s357 + $0x10] sm:$0xff]
    %v361 = vld [vmem:[%s357 + $0x18] sm:$0xff]
    %v362 = vld [vmem:[%s357 + $0x20] sm:$0xff]
    %v363 = vld [vmem:[%s357 + $0x28] sm:$0xff]
    %v364 = vld [vmem:[%s357 + $0x30] sm:$0xff]
    %v365 = vld [vmem:[%s357 + $0x38] sm:$0xff]
    %v366 = vld [vmem:[%s357 + $0x40] sm:$0xff]
    %v367 = vld [vmem:[%s357 + $0x48] sm:$0xff]
    %v368 = vld [vmem:[%s357 + $0x50] sm:$0xff]
    %v369 = vld [vmem:[%s357 + $0x58] sm:$0xff]
    %v370 = vld [vmem:[%s357 + $0x60] sm:$0xff]
    %v371 = vld [vmem:[%s357 + $0x68] sm:$0xff]
    %v372 = vld [vmem:[%s357 + $0x70] sm:$0xff]
    %v373 = vld [vmem:[%s357 + $0x78] sm:$0xff]
    %s374 = scalar_lea.vmem [#allocation7], 4
    %v375 = vld [vmem:[%s374] sm:$0x3]
    %v377 = vperm.slane %v375, 0
    %v378 = vperm.slane %v375, 1
    %v397 = vunpack.c.l.b16 %v358
    %v398 = vunpack.c.h.b16 %v358
    %v399 = vunpack.c.l.b16 %v359
    %v400 = vunpack.c.h.b16 %v359
    %v401 = vunpack.c.l.b16 %v360
    %v402 = vunpack.c.h.b16 %v360
    %v403 = vunpack.c.l.b16 %v361
    %v404 = vunpack.c.h.b16 %v361
    %v405 = vunpack.c.l.b16 %v362
    %v406 = vunpack.c.h.b16 %v362
    %v407 = vunpack.c.l.b16 %v363
    %v408 = vunpack.c.h.b16 %v363
    %v409 = vunpack.c.l.b16 %v364
    %v410 = vunpack.c.h.b16 %v364
    %v411 = vunpack.c.l.b16 %v365
    %v412 = vunpack.c.h.b16 %v365
    %v413 = vunpack.c.l.b16 %v366
    %v414 = vunpack.c.h.b16 %v366
    %v415 = vunpack.c.l.b16 %v367
    %v416 = vunpack.c.h.b16 %v367
    %v417 = vunpack.c.l.b16 %v368
    %v418 = vunpack.c.h.b16 %v368
    %v419 = vunpack.c.l.b16 %v369
    %v420 = vunpack.c.h.b16 %v369
    %v421 = vunpack.c.l.b16 %v370
    %v422 = vunpack.c.h.b16 %v370
    %v423 = vunpack.c.l.b16 %v371
    %v424 = vunpack.c.h.b16 %v371
    %v425 = vunpack.c.l.b16 %v372
    %v426 = vunpack.c.h.b16 %v372
    %v427 = vunpack.c.l.b16 %v373
    %v428 = vunpack.c.h.b16 %v373
    %v429 = vpack.c.b16 %v399, %v397
    %v430 = vpack.c.b16 %v400, %v398
    %v431 = vpack.c.b16 %v403, %v401
    %v432 = vpack.c.b16 %v404, %v402
    %v433 = vpack.c.b16 %v407, %v405
    %v434 = vpack.c.b16 %v408, %v406
    %v435 = vpack.c.b16 %v411, %v409
    %v436 = vpack.c.b16 %v412, %v410
    %v437 = vpack.c.b16 %v415, %v413
    %v438 = vpack.c.b16 %v416, %v414
    %v439 = vpack.c.b16 %v419, %v417
    %v440 = vpack.c.b16 %v420, %v418
    %v441 = vpack.c.b16 %v423, %v421
    %v442 = vpack.c.b16 %v424, %v422
    %v443 = vpack.c.b16 %v427, %v425
    %v444 = vpack.c.b16 %v428, %v426
    %461 = vmatpush.bf16.msra.mxu0 %v443
    %462 = vmatpush.bf16.msra.mxu0 %v441
    %463 = vmatpush.bf16.msra.mxu0 %v439
    %464 = vmatpush.bf16.msra.mxu0 %v437
    %465 = vmatpush.bf16.msra.mxu0 %v435
    %466 = vmatpush.bf16.msra.mxu0 %v433
    %467 = vmatpush.bf16.msra.mxu0 %v431
    %468 = vmatpush.bf16.msra.mxu0 %v429
    %469 = vmatmul.bf16.gmra.mxu0 %v356
    %v470 = vpop.f32.mrf.mxu0
    %v471 = vadd.f32 %v377, %v470
    %v472 = vpop.f32.mrf.mxu0
    %v473 = vadd.f32 %v377, %v472
    %474 = vdwg.mxu0
    %475 = vmatpush.bf16.msra.mxu0 %v444
    %476 = vmatpush.bf16.msra.mxu0 %v442
    %477 = vmatpush.bf16.msra.mxu0 %v440
    %478 = vmatpush.bf16.msra.mxu0 %v438
    %479 = vmatpush.bf16.msra.mxu0 %v436
    %480 = vmatpush.bf16.msra.mxu0 %v434
    %481 = vmatpush.bf16.msra.mxu0 %v432
    %482 = vmatpush.bf16.msra.mxu0 %v430
    %483 = vmatmul.bf16.gmra.mxu0 %v356
    %v484 = vpop.f32.mrf.mxu0
    %v485 = vadd.f32 %v378, %v484
    %v486 = vpop.f32.mrf.mxu0
    %v487 = vadd.f32 %v378, %v486
    %488 = vdwg.mxu0
    %v489 = vmax.f32 %v471, 0.0
    %v490 = vmax.f32 %v473, 0.0
    %v491 = vtanh.pop %v485
    %v492 = vtanh.pop %v487
    %v493 = vmul.f32 %v491, 0.5
    %v494 = vmul.f32 %v492, 0.5
    %v495 = vadd.f32 %v493, 0.5
    %v496 = vadd.f32 %v494, 0.5
    %v497 = vsub.f32 %v489, %v354
    %v498 = vsub.f32 %v490, %v355
    %v499 = vmul.f32 %v495, %v497
    %v500 = vmul.f32 %v496, %v498
    %v501 = vadd.f32 %v354, %v499
    %v502 = vadd.f32 %v355, %v500
    %v503 = vpack.c.bf16 %v502, %v501
    %s504 = scalar_lea.vmem [#allocation5], 384
    %v505 = vld [vmem:[%s504] sm:$0xff]
    %v506 = vld [vmem:[%s504 + $0x8] sm:$0xff]
    %v507 = vld [vmem:[%s504 + $0x10] sm:$0xff]
    %v508 = vld [vmem:[%s504 + $0x18] sm:$0xff]
    %v509 = vld [vmem:[%s504 + $0x20] sm:$0xff]
    %v510 = vld [vmem:[%s504 + $0x28] sm:$0xff]
    %v511 = vld [vmem:[%s504 + $0x30] sm:$0xff]
    %v512 = vld [vmem:[%s504 + $0x38] sm:$0xff]
    %v513 = vld [vmem:[%s504 + $0x40] sm:$0xff]
    %v514 = vld [vmem:[%s504 + $0x48] sm:$0xff]
    %v515 = vld [vmem:[%s504 + $0x50] sm:$0xff]
    %v516 = vld [vmem:[%s504 + $0x58] sm:$0xff]
    %v517 = vld [vmem:[%s504 + $0x60] sm:$0xff]
    %v518 = vld [vmem:[%s504 + $0x68] sm:$0xff]
    %v519 = vld [vmem:[%s504 + $0x70] sm:$0xff]
    %v520 = vld [vmem:[%s504 + $0x78] sm:$0xff]
    %s521 = scalar_lea.vmem [#allocation7], 6
    %v522 = vld [vmem:[%s521] sm:$0x3]
    %v524 = vperm.slane %v522, 0
    %v525 = vperm.slane %v522, 1
    %v544 = vunpack.c.l.b16 %v505
    %v545 = vunpack.c.h.b16 %v505
    %v546 = vunpack.c.l.b16 %v506
    %v547 = vunpack.c.h.b16 %v506
    %v548 = vunpack.c.l.b16 %v507
    %v549 = vunpack.c.h.b16 %v507
    %v550 = vunpack.c.l.b16 %v508
    %v551 = vunpack.c.h.b16 %v508
    %v552 = vunpack.c.l.b16 %v509
    %v553 = vunpack.c.h.b16 %v509
    %v554 = vunpack.c.l.b16 %v510
    %v555 = vunpack.c.h.b16 %v510
    %v556 = vunpack.c.l.b16 %v511
    %v557 = vunpack.c.h.b16 %v511
    %v558 = vunpack.c.l.b16 %v512
    %v559 = vunpack.c.h.b16 %v512
    %v560 = vunpack.c.l.b16 %v513
    %v561 = vunpack.c.h.b16 %v513
    %v562 = vunpack.c.l.b16 %v514
    %v563 = vunpack.c.h.b16 %v514
    %v564 = vunpack.c.l.b16 %v515
    %v565 = vunpack.c.h.b16 %v515
    %v566 = vunpack.c.l.b16 %v516
    %v567 = vunpack.c.h.b16 %v516
    %v568 = vunpack.c.l.b16 %v517
    %v569 = vunpack.c.h.b16 %v517
    %v570 = vunpack.c.l.b16 %v518
    %v571 = vunpack.c.h.b16 %v518
    %v572 = vunpack.c.l.b16 %v519
    %v573 = vunpack.c.h.b16 %v519
    %v574 = vunpack.c.l.b16 %v520
    %v575 = vunpack.c.h.b16 %v520
    %v576 = vpack.c.b16 %v546, %v544
    %v577 = vpack.c.b16 %v547, %v545
    %v578 = vpack.c.b16 %v550, %v548
    %v579 = vpack.c.b16 %v551, %v549
    %v580 = vpack.c.b16 %v554, %v552
    %v581 = vpack.c.b16 %v555, %v553
    %v582 = vpack.c.b16 %v558, %v556
    %v583 = vpack.c.b16 %v559, %v557
    %v584 = vpack.c.b16 %v562, %v560
    %v585 = vpack.c.b16 %v563, %v561
    %v586 = vpack.c.b16 %v566, %v564
    %v587 = vpack.c.b16 %v567, %v565
    %v588 = vpack.c.b16 %v570, %v568
    %v589 = vpack.c.b16 %v571, %v569
    %v590 = vpack.c.b16 %v574, %v572
    %v591 = vpack.c.b16 %v575, %v573
    %608 = vmatpush.bf16.msra.mxu0 %v590
    %609 = vmatpush.bf16.msra.mxu0 %v588
    %610 = vmatpush.bf16.msra.mxu0 %v586
    %611 = vmatpush.bf16.msra.mxu0 %v584
    %612 = vmatpush.bf16.msra.mxu0 %v582
    %613 = vmatpush.bf16.msra.mxu0 %v580
    %614 = vmatpush.bf16.msra.mxu0 %v578
    %615 = vmatpush.bf16.msra.mxu0 %v576
    %616 = vmatmul.bf16.gmra.mxu0 %v503
    %v617 = vpop.f32.mrf.mxu0
    %v618 = vadd.f32 %v524, %v617
    %v619 = vpop.f32.mrf.mxu0
    %v620 = vadd.f32 %v524, %v619
    %621 = vdwg.mxu0
    %622 = vmatpush.bf16.msra.mxu0 %v591
    %623 = vmatpush.bf16.msra.mxu0 %v589
    %624 = vmatpush.bf16.msra.mxu0 %v587
    %625 = vmatpush.bf16.msra.mxu0 %v585
    %626 = vmatpush.bf16.msra.mxu0 %v583
    %627 = vmatpush.bf16.msra.mxu0 %v581
    %628 = vmatpush.bf16.msra.mxu0 %v579
    %629 = vmatpush.bf16.msra.mxu0 %v577
    %630 = vmatmul.bf16.gmra.mxu0 %v503
    %v631 = vpop.f32.mrf.mxu0
    %v632 = vadd.f32 %v525, %v631
    %v633 = vpop.f32.mrf.mxu0
    %v634 = vadd.f32 %v525, %v633
    %635 = vdwg.mxu0
    %v636 = vmax.f32 %v618, 0.0
    %v637 = vmax.f32 %v620, 0.0
    %v638 = vtanh.pop %v632
    %v639 = vtanh.pop %v634
    %v640 = vmul.f32 %v638, 0.5
    %v641 = vmul.f32 %v639, 0.5
    %v642 = vadd.f32 %v640, 0.5
    %v643 = vadd.f32 %v641, 0.5
    %v644 = vsub.f32 %v636, %v501
    %v645 = vsub.f32 %v637, %v502
    %v646 = vmul.f32 %v642, %v644
    %v647 = vmul.f32 %v643, %v645
    %v648 = vadd.f32 %v501, %v646
    %v649 = vadd.f32 %v502, %v647
    %650 = vst [vmem:[#allocation8] sm:$0xff] %v648
    %651 = vst [vmem:[#allocation8 + $0x8] sm:$0xff] %v649
    // Predicated region
    $region26: #{tpu_custom_call.1} parent=1 // pred_check
      _
    $region27: #{tpu_custom_call.1} parent=1 // pred_check_branch
      %653 = sbr.rel (0) target = $region29
    $region28: #{tpu_custom_call.1} parent=1 // pred_region
      %655 = vsyncadd [#allocation4], 0
      %s656 = sshll.u32 [#allocation8], 4
      %s657 = int_to_ptr.vmem [resolvable:$true] %s656
      %s658 = sshll.u32 %s3, 4
      %s659 = int_to_ptr.hbm [resolvable:$true] %s658
      %664 = dma.vmem_to_hbm [thread:$0]  %s657, 256, %s659, [#allocation4], 128, 128, 8
    $region29: #{tpu_custom_call.1} parent=1 // pred_fallthru
      _
    // Predicated region
    $region30: #{tpu_custom_call.1} parent=1 // pred_check
      _
    $region31: #{tpu_custom_call.1} parent=1 // pred_check_branch
      %666 = sbr.rel (0) target = $region33
    $region32: #{tpu_custom_call.1} parent=1 // pred_region
      %668 = dma.done [#allocation4], 256
    $region33: #{tpu_custom_call.1} parent=1 // pred_fallthru
      _
    %669 = vsyncpa [#allocation3], 1
    %670 = vsyncpa [#allocation6], 1
    %671 = vsyncpa [#allocation4], 1

</llo_original>
